<compile_context>
chip_gen: v5e
topology: v5e:2x2
jax: 0.10.0
libtpu: 0.0.40
codegen_flags: <defaults>
</compile_context>

<pallas_src>
import jax
import jax.numpy as jnp
from jax.experimental import pallas as pl
from jax.experimental.pallas import tpu as pltpu


def conv1x1_add_relu_kernel(x_ref, w_ref, c_ref, o_ref):
    # x_ref: (C_in, tile)  w_ref: (C_out, C_in)  c_ref: (C_out, 1) = bias + other
    x = x_ref[...].astype(jnp.float32)
    w = w_ref[...]
    c_in = x.shape[0]
    # C_in is tiny (3): unrolled VPU broadcast multiply-adds instead of a
    # K=3 MXU matmul.  (C_out,1) * (1,tile) broadcasts to (C_out, tile).
    y = w[:, 0:1] * x[0:1, :]
    for k in range(1, c_in):
        y = y + w[:, k:k + 1] * x[k:k + 1, :]
    y = y + c_ref[...]                                      # folded bias + other
    o_ref[...] = jnp.maximum(y, 0.0).astype(o_ref.dtype)    # ReLU


_LANE = 128
_MAX_TILE = 65536  # lanes/step; (C_in+C_out)*tile*4*2 ~= 5.8 MiB double-buffered


def _choose_tile(n, pp):
    """Pick the flattened-spatial tile size (Python ints, trace time)."""
    if pp <= _MAX_TILE and (n >= 2 or pp <= 2 * _LANE):
        # One chunk per image: lane-dense full-extent block.  Batch dim already
        # provides >=2 grid steps (or the problem is too tiny to split).
        return pp
    # Split the spatial dim: aim for >=2 chunks (keeps both v7x TCs busy when
    # n == 1) while capping per-step VMEM.  Must be a multiple of 128.
    half = pl.cdiv(pl.cdiv(pp, 2), _LANE) * _LANE
    return max(_LANE, min(_MAX_TILE, half))


def conv1x1_pad_add_relu(x_nchw, weight, bias, other, *, padding=1):
    """weight: (C_out, C_in, 1, 1), bias: (C_out,) or None, other: (C_out,) const."""
    N, C_in, H, W = x_nchw.shape
    C_out = weight.shape[0]
    out_dtype = x_nchw.dtype

    # Zero-pad the (cheap, C_in-channel) input once: for a 1x1 conv this makes
    # the kernel output exactly the padded conv output.
    if padding:
        x_p = jnp.pad(x_nchw, ((0, 0), (0, 0),
                               (padding, padding), (padding, padding)))
    else:
        x_p = x_nchw
    Hp, Wp = H + 2 * padding, W + 2 * padding
    Pp = Hp * Wp

    x_flat = x_p.reshape(N, C_in, Pp)                       # free reshape (contiguous)

    tile = _choose_tile(N, Pp)
    chunks = pl.cdiv(Pp, tile)
    P_pad = chunks * tile
    if P_pad != Pp:
        x_flat = jnp.pad(x_flat, ((0, 0), (0, 0), (0, P_pad - Pp)))

    w2 = weight.reshape(C_out, C_in).astype(jnp.float32)    # (C_out, C_in)
    b = (jnp.zeros((C_out,), jnp.float32) if bias is None
         else bias.astype(jnp.float32))
    other_vec = jnp.asarray(other, jnp.float32).reshape(C_out)
    const = (b + other_vec).reshape(C_out, 1)               # folded bias + other

    cost = pl.CostEstimate(
        flops=2 * C_in * C_out * N * P_pad,
        transcendentals=0,
        bytes_accessed=4 * (C_in + C_out) * N * P_pad,
    )

    out_flat = pl.pallas_call(
        conv1x1_add_relu_kernel,
        out_shape=jax.ShapeDtypeStruct((N, C_out, P_pad), out_dtype),
        grid=(N, chunks),
        in_specs=[
            pl.BlockSpec((pl.Squeezed(), C_in, tile), lambda n, p: (n, 0, p)),
            pl.BlockSpec((C_out, C_in), lambda n, p: (0, 0)),
            pl.BlockSpec((C_out, 1), lambda n, p: (0, 0)),
        ],
        out_specs=pl.BlockSpec((pl.Squeezed(), C_out, tile), lambda n, p: (n, 0, p)),
        compiler_params=pltpu.CompilerParams(
            dimension_semantics=("parallel", "parallel")),
        cost_estimate=cost,
    )(x_flat, w2, const)

    if P_pad != Pp:
        out_flat = out_flat[:, :, :Pp]
    return out_flat.reshape(N, C_out, Hp, Wp)               # free reshape


def _reference(x_nchw, weight, bias, other, padding=1):
    y = jax.lax.conv_general_dilated(
        x_nchw, weight,
        window_strides=(1, 1),
        padding=[(padding, padding), (padding, padding)],
        dimension_numbers=("NCHW", "OIHW", "NCHW"),
    )
    if bias is not None:
        y = y + bias.reshape(1, -1, 1, 1)
    y = y + jnp.asarray(other).reshape(1, -1, 1, 1)
    return jnp.maximum(y, 0.0)


if __name__ == "__main__":
    key = jax.random.PRNGKey(0)
    kx1, kx2, kw, kb = jax.random.split(key, 4)

    C_in, C_out = 3, 8
    # deterministic "parameters" (Conv2d(3, 8, 1) shapes)
    weight = jax.random.normal(kw, (C_out, C_in, 1, 1), dtype=jnp.float32) * 0.1
    bias = jax.random.normal(kb, (C_out,), dtype=jnp.float32) * 0.1
    # deterministic stand-in for the undefined `other`
    other = jnp.linspace(-0.5, 0.5, C_out, dtype=jnp.float32)

    run = jax.jit(lambda x: conv1x1_pad_add_relu(x, weight, bias, other))

    # Small shape: grid over batch (2 parallel steps), single spatial chunk.
    x_small = jax.random.normal(kx1, (2, C_in, 16, 16), dtype=jnp.float32)
    out_small = jax.block_until_ready(run(x_small))
    ref_small = _reference(x_small, weight, bias, other)
    assert out_small.shape == (2, C_out, 18, 18), out_small.shape
    assert jnp.allclose(out_small, ref_small, atol=1e-5, rtol=1e-5), "mismatch (small)"

    # Original module shape (N=1): exercises the >=2 spatial-chunk path.
    x_spec = jax.random.normal(kx2, (1, C_in, 64, 64), dtype=jnp.float32)
    out_spec = jax.block_until_ready(run(x_spec))
    ref_spec = _reference(x_spec, weight, bias, other)
    assert out_spec.shape == (1, C_out, 66, 66), out_spec.shape
    assert jnp.allclose(out_spec, ref_spec, atol=1e-5, rtol=1e-5), "mismatch (spec)"

    print("KERNEL_OK")
</pallas_src>

<mosaic_0001>
module attributes {stable_mosaic.version = 11 : i64} {
  func.func @conv1x1_add_relu_kernel(%arg0: i32, %arg1: i32, %arg2: memref<1x3x324xf32, #tpu.memory_space<vmem>>, %arg3: memref<8x3xf32, #tpu.memory_space<vmem>>, %arg4: memref<8x1xf32, #tpu.memory_space<vmem>>, %arg5: memref<1x8x324xf32, #tpu.memory_space<vmem>>) attributes {dimension_semantics = [#tpu.dimension_semantics<parallel>, #tpu.dimension_semantics<parallel>], iteration_bounds = array<i64: 2, 1>, scalar_prefetch = 0 : i64, scratch_operands = 0 : i64, tpu.core_type = #tpu.core_type<tc>, window_params = [{transform_indices = @transform_0, window_bounds = array<i64: 1, 3, 324>}, {pipeline_mode = #tpu.pipeline_mode<synchronous>, transform_indices = @transform_1, window_bounds = array<i64: 8, 3>}, {pipeline_mode = #tpu.pipeline_mode<synchronous>, transform_indices = @transform_2, window_bounds = array<i64: 8, 1>}, {transform_indices = @transform_3, window_bounds = array<i64: 1, 8, 324>}]} {
    %c0 = arith.constant 0 : index
    %c0_0 = arith.constant 0 : index
    %c0_1 = arith.constant 0 : index
    %0 = vector.load %arg2[%c0, %c0_0, %c0_1] : memref<1x3x324xf32, #tpu.memory_space<vmem>>, vector<1x3x324xf32>
    %1 = vector.shape_cast %0 : vector<1x3x324xf32> to vector<3x324xf32>
    %c0_2 = arith.constant 0 : index
    %c0_3 = arith.constant 0 : index
    %2 = vector.load %arg3[%c0_2, %c0_3] : memref<8x3xf32, #tpu.memory_space<vmem>>, vector<8x3xf32>
    %3 = vector.extract_strided_slice %2 {offsets = [0, 0], sizes = [8, 1], strides = [1, 1]} : vector<8x3xf32> to vector<8x1xf32>
    %4 = vector.extract_strided_slice %1 {offsets = [0, 0], sizes = [1, 324], strides = [1, 1]} : vector<3x324xf32> to vector<1x324xf32>
    %5 = vector.broadcast %3 : vector<8x1xf32> to vector<8x324xf32>
    %6 = vector.broadcast %4 : vector<1x324xf32> to vector<8x324xf32>
    %7 = arith.mulf %5, %6 : vector<8x324xf32>
    %8 = vector.extract_strided_slice %2 {offsets = [0, 1], sizes = [8, 1], strides = [1, 1]} : vector<8x3xf32> to vector<8x1xf32>
    %9 = vector.extract_strided_slice %1 {offsets = [1, 0], sizes = [1, 324], strides = [1, 1]} : vector<3x324xf32> to vector<1x324xf32>
    %10 = vector.broadcast %8 : vector<8x1xf32> to vector<8x324xf32>
    %11 = vector.broadcast %9 : vector<1x324xf32> to vector<8x324xf32>
    %12 = arith.mulf %10, %11 : vector<8x324xf32>
    %13 = arith.addf %7, %12 : vector<8x324xf32>
    %14 = vector.extract_strided_slice %2 {offsets = [0, 2], sizes = [8, 1], strides = [1, 1]} : vector<8x3xf32> to vector<8x1xf32>
    %15 = vector.extract_strided_slice %1 {offsets = [2, 0], sizes = [1, 324], strides = [1, 1]} : vector<3x324xf32> to vector<1x324xf32>
    %16 = vector.broadcast %14 : vector<8x1xf32> to vector<8x324xf32>
    %17 = vector.broadcast %15 : vector<1x324xf32> to vector<8x324xf32>
    %18 = arith.mulf %16, %17 : vector<8x324xf32>
    %19 = arith.addf %13, %18 : vector<8x324xf32>
    %c0_4 = arith.constant 0 : index
    %c0_5 = arith.constant 0 : index
    %20 = vector.load %arg4[%c0_4, %c0_5] : memref<8x1xf32, #tpu.memory_space<vmem>>, vector<8x1xf32>
    %21 = vector.broadcast %20 : vector<8x1xf32> to vector<8x324xf32>
    %22 = arith.addf %19, %21 : vector<8x324xf32>
    %cst = arith.constant 0.000000e+00 : f32
    %23 = vector.broadcast %cst : f32 to vector<8x324xf32>
    %24 = arith.maximumf %22, %23 : vector<8x324xf32>
    %c0_6 = arith.constant 0 : index
    %c0_7 = arith.constant 0 : index
    %c0_8 = arith.constant 0 : index
    %25 = vector.load %arg5[%c0_6, %c0_7, %c0_8] : memref<1x8x324xf32, #tpu.memory_space<vmem>>, vector<1x8x324xf32>
    %26 = vector.shape_cast %25 : vector<1x8x324xf32> to vector<8x324xf32>
    %27 = vector.shape_cast %24 : vector<8x324xf32> to vector<1x8x324xf32>
    tpu.vector_store %arg5[%c0_6, %c0_7, %c0_8], %27 {strides = array<i32>} : memref<1x8x324xf32, #tpu.memory_space<vmem>>, vector<1x8x324xf32>,
    return
  }
  func.func @transform_0(%arg0: i32, %arg1: i32) -> (i32, i32, i32) {
    %c0_i32 = arith.constant 0 : i32
    %c0_i32_0 = arith.constant 0 : i32
    return %arg0, %c0_i32, %arg1 : i32, i32, i32
  }
  func.func @transform_1(%arg0: i32, %arg1: i32) -> (i32, i32) {
    %c0_i32 = arith.constant 0 : i32
    %c0_i32_0 = arith.constant 0 : i32
    %c0_i32_1 = arith.constant 0 : i32
    return %c0_i32, %c0_i32_0 : i32, i32
  }
  func.func @transform_2(%arg0: i32, %arg1: i32) -> (i32, i32) {
    %c0_i32 = arith.constant 0 : i32
    %c0_i32_0 = arith.constant 0 : i32
    %c0_i32_1 = arith.constant 0 : i32
    return %c0_i32, %c0_i32_0 : i32, i32
  }
  func.func @transform_3(%arg0: i32, %arg1: i32) -> (i32, i32, i32) {
    %c0_i32 = arith.constant 0 : i32
    %c0_i32_0 = arith.constant 0 : i32
    return %arg0, %c0_i32, %arg1 : i32, i32, i32
  }
}

</mosaic_0001>

<llo_original>
// kernel: _lambda_.1
$region0: #{_lambda_.1}
  #allocation0 [shape = 'u32[]', space=smem, size = 0x4, offset = 0x4, fixed_abs, tag = 'smem constant byte address 0x4 - core index']
  #allocation1 [shape = 'u32[72,128]{1,0:T(1,128)}', space=vmem, size = 0x9000, scoped, tag = 'internal scratch']
  %s0 = inlined_call_operand.vmem [shape: f32[2,3,324], index: 0, kind: input, shape index: {}]
  %s1 = inlined_call_operand.vmem [shape: f32[8,3], index: 1, kind: input, shape index: {}]
  %s2 = inlined_call_operand.vmem [shape: f32[8,1], index: 2, kind: input, shape index: {}]
  %s3 = inlined_call_operand.vmem [shape: f32[2,8,324], index: 3, kind: output, shape index: {}]
  %s4 = sld [smem:[#allocation0]]
  $region45: #{_lambda_.1} parent=0
    _
  %s6 = ssub.s32 1, %s4
  %s7 = scalar_select 0, %s6, %s4
  loop: start=0, step=1, limit=4
  $region2: #{_lambda_.1} parent=0 // loop_pre_header
    _
  $region3: #{_lambda_.1} parent=0 // loop_header
    %s9 = sphi 0, %s13
    %p10 = scmp.ge.s32.totalorder %s9, 4
    %s16 = sphi 0, %s28
    %s17 = sphi 0, %s24
    %s18 = sphi 0, %s16
    %s19 = sphi 0, %s17
    %s20 = sphi 0, %s18
    %s21 = sphi 0, %s19
    %s33 = sphi 0, %s35
    %s36 = sphi 0, %s33
    %s37 = sphi 0, %s36
    %s53 = sphi 0, %s37
    %s57 = sphi 0, %s57
    %s59 = sphi 0, %s57
    %s60 = sphi 0, %s59
    %s74 = sphi 0, %s60
    %s78 = sphi 0, %s78
    %s80 = sphi 0, %s78
    %s81 = sphi 0, %s80
    %s95 = sphi 0, %s81
    %s103 = sphi 0, %s105
    %s106 = sphi 0, %s103
    %s107 = sphi 0, %s106
    %s123 = sphi 0, %s107
  $region4: #{_lambda_.1} parent=0 // loop_header_branch
    %12 = sbr.rel (%p10) target = $region8
  $region5: #{_lambda_.1} parent=0 // loop_body
    %s14 = ssub.s32 %s9, 1
    %s15 = ssub.s32 %s9, 2
    %s22 = sadd.s32 1, %s17
    %p23 = scmp.ge.s32.totalorder %s22, 1
    %s24 = scalar_select %p23, 0, %s22
    %s25 = sadd.s32 1, %s16
    %s26 = scalar_select %p23, %s25, %s16
    %p27 = scmp.ge.s32.totalorder %s26, 2
    %s28 = scalar_select %p27, 0, %s26
    %s29 = ssub.s32 %s16, %s28
    %s30 = ssub.s32 %s17, %s24
    %s31 = sor.u32 %s29, %s30
    %p32 = scmp.eq.s32.totalorder %s31, 0
    %s34 = sadd.s32 %s33, 1
    %s35 = scalar_select %p32, %s33, %s34
    %p38 = pneg %p32
    %p39 = scmp.eq.s32.totalorder %s9, 1
    %p40 = por %p38, %p39
    %p41 = scmp.ne.s32.totalorder %s33, %s36
    %p42 = scmp.eq.s32.totalorder %s9, 0
    %p43 = por %p41, %p42
    %p44 = scmp.ne.s32.totalorder %s33, %s36
    %p45 = scmp.eq.s32.totalorder %s14, 1
    %p46 = por %p44, %p45
    %p47 = scmp.ne.s32.totalorder %s36, %s37
    %p48 = scmp.eq.s32.totalorder %s14, 0
    %p49 = por %p47, %p48
    %p50 = scmp.ne.s32.totalorder %s36, %s37
    %p51 = scmp.eq.s32.totalorder %s15, 1
    %p52 = por %p50, %p51
    %p54 = scmp.ne.s32.totalorder %s37, %s53
    %p55 = scmp.eq.s32.totalorder %s15, 0
    %p56 = por %p54, %p55
    %s58 = sadd.s32 %s57, 1
    %p61 = scmp.eq.s32.totalorder %s9, 1
    %p62 = scmp.ne.s32.totalorder %s57, %s59
    %p63 = scmp.eq.s32.totalorder %s9, 0
    %p64 = por %p62, %p63
    %p65 = scmp.ne.s32.totalorder %s57, %s59
    %p66 = scmp.eq.s32.totalorder %s14, 1
    %p67 = por %p65, %p66
    %p68 = scmp.ne.s32.totalorder %s59, %s60
    %p69 = scmp.eq.s32.totalorder %s14, 0
    %p70 = por %p68, %p69
    %p71 = scmp.ne.s32.totalorder %s59, %s60
    %p72 = scmp.eq.s32.totalorder %s15, 1
    %p73 = por %p71, %p72
    %p75 = scmp.ne.s32.totalorder %s60, %s74
    %p76 = scmp.eq.s32.totalorder %s15, 0
    %p77 = por %p75, %p76
    %s79 = sadd.s32 %s78, 1
    %p82 = scmp.eq.s32.totalorder %s9, 1
    %p83 = scmp.ne.s32.totalorder %s78, %s80
    %p84 = scmp.eq.s32.totalorder %s9, 0
    %p85 = por %p83, %p84
    %p86 = scmp.ne.s32.totalorder %s78, %s80
    %p87 = scmp.eq.s32.totalorder %s14, 1
    %p88 = por %p86, %p87
    %p89 = scmp.ne.s32.totalorder %s80, %s81
    %p90 = scmp.eq.s32.totalorder %s14, 0
    %p91 = por %p89, %p90
    %p92 = scmp.ne.s32.totalorder %s80, %s81
    %p93 = scmp.eq.s32.totalorder %s15, 1
    %p94 = por %p92, %p93
    %p96 = scmp.ne.s32.totalorder %s81, %s95
    %p97 = scmp.eq.s32.totalorder %s15, 0
    %p98 = por %p96, %p97
    %s99 = ssub.s32 %s16, %s28
    %s100 = ssub.s32 %s17, %s24
    %s101 = sor.u32 %s99, %s100
    %p102 = scmp.eq.s32.totalorder %s101, 0
    %s104 = sadd.s32 %s103, 1
    %s105 = scalar_select %p102, %s103, %s104
    %p108 = pneg %p102
    %p109 = scmp.eq.s32.totalorder %s9, 1
    %p110 = por %p108, %p109
    %p111 = scmp.ne.s32.totalorder %s103, %s106
    %p112 = scmp.eq.s32.totalorder %s9, 0
    %p113 = por %p111, %p112
    %p114 = scmp.ne.s32.totalorder %s103, %s106
    %p115 = scmp.eq.s32.totalorder %s14, 1
    %p116 = por %p114, %p115
    %p117 = scmp.ne.s32.totalorder %s106, %s107
    %p118 = scmp.eq.s32.totalorder %s14, 0
    %p119 = por %p117, %p118
    %p120 = scmp.ne.s32.totalorder %s106, %s107
    %p121 = scmp.eq.s32.totalorder %s15, 1
    %p122 = por %p120, %p121
    %p124 = scmp.ne.s32.totalorder %s107, %s123
    %p125 = scmp.eq.s32.totalorder %s15, 0
    %p126 = por %p124, %p125
    %p127 = scmp.le.s32.totalorder 1, %s9
    %p128 = scmp.lt.s32.totalorder %s9, 3
    %p129 = pnand %p127, %p128
    %p130 = pneg %p129
    // Predicated region
    $region9: #{_lambda_.1} parent=5 // pred_check
      _
    $region10: #{_lambda_.1} parent=5 // pred_check_branch
      %132 = sbr.rel (%p129) target = $region12
    $region11: #{_lambda_.1} parent=5 // pred_region
      %s133 = ssub.s32 %s9, 1
      // Predicated region
      $region13: #{_lambda_.1} parent=11 // pred_check
        %p134 = pneg %p70
      $region14: #{_lambda_.1} parent=11 // pred_check_branch
        %136 = sbr.rel (%p134) target = $region16
      $region15: #{_lambda_.1} parent=11 // pred_region
        _
      $region16: #{_lambda_.1} parent=11 // pred_fallthru
        _
      // Predicated region
      $region17: #{_lambda_.1} parent=11 // pred_check
        %p137 = pneg %p91
      $region18: #{_lambda_.1} parent=11 // pred_check_branch
        %139 = sbr.rel (%p137) target = $region20
      $region19: #{_lambda_.1} parent=11 // pred_region
        _
      $region20: #{_lambda_.1} parent=11 // pred_fallthru
        _
    $region12: #{_lambda_.1} parent=5 // pred_fallthru
      _
    %p140 = scmp.lt.s32.totalorder %s9, 2
    // Predicated region
    $region21: #{_lambda_.1} parent=5 // pred_check
      %p141 = pneg %p140
    $region22: #{_lambda_.1} parent=5 // pred_check_branch
      %143 = sbr.rel (%p141) target = $region24
    $region23: #{_lambda_.1} parent=5 // pred_region
      // Predicated region
      $region25: #{_lambda_.1} parent=23 // pred_check
        %p144 = pneg %p43
      $region26: #{_lambda_.1} parent=23 // pred_check_branch
        %146 = sbr.rel (%p144) target = $region28
      $region27: #{_lambda_.1} parent=23 // pred_region
        %s147 = smul.u32 3, %s17
        %p148 = scmp.lt.s32.totalorder %s16, 1
        %s149 = scalar_select %p148, %s16, 1
        %p150 = scmp.lt.s32.totalorder %s147, 2
        %s151 = scalar_select %p150, %s147, 2
        %s152 = smul.addr %s149, 3
        %s153 = sadd.s32 %s151, %s152
        %s154 = smul.addr %s153, 4
        %s155 = scalar_lea.vmem %s0, %s154
        %s156 = smul.u32 3, %s17
      $region28: #{_lambda_.1} parent=23 // pred_fallthru
        _
    $region24: #{_lambda_.1} parent=5 // pred_fallthru
      _
    %p157 = scmp.le.s32.totalorder 1, %s9
    %p158 = scmp.lt.s32.totalorder %s9, 3
    %p159 = pnand %p157, %p158
    %p160 = pneg %p159
    // Predicated region
    $region29: #{_lambda_.1} parent=5 // pred_check
      _
    $region30: #{_lambda_.1} parent=5 // pred_check_branch
      %162 = sbr.rel (%p159) target = $region32
    $region31: #{_lambda_.1} parent=5 // pred_region
      %s163 = ssub.s32 %s9, 1
      %s164 = smul.u32 3, %s19
      %p165 = scmp.lt.s32.totalorder %s18, 1
      %s166 = scalar_select %p165, %s18, 1
      %p167 = scmp.lt.s32.totalorder %s164, 2
      %s168 = scalar_select %p167, %s164, 2
      %s169 = smul.addr %s166, 3
      %s170 = sadd.s32 %s168, %s169
      %s171 = smul.addr %s170, 4
      %s172 = scalar_lea.vmem %s0, %s171
      %p173 = pneg %p49
      %p174 = pneg %p46
      %p175 = pneg %p70
      %p176 = pneg %p67
      %p177 = pneg %p91
      %p178 = pneg %p88
      %p179 = pneg %p119
      %p180 = pneg %p116
      %s181 = smul.u32 3, %s19
      %p182 = scmp.lt.s32.totalorder %s18, 1
      %s183 = scalar_select %p182, %s18, 1
      %p184 = scmp.lt.s32.totalorder %s181, 2
      %s185 = scalar_select %p184, %s181, 2
      %s186 = smul.addr %s183, 3
      %s187 = sadd.s32 %s185, %s186
      %s188 = smul.addr %s187, 8
      %s189 = scalar_lea.vmem %s3, %s188
      %s190 = smul.u32 3, %s19
      %p191 = scmp.lt.s32.totalorder %s18, 1
      %s192 = scalar_select %p191, %s18, 1
      %p193 = scmp.lt.s32.totalorder %s190, 2
      %s194 = scalar_select %p193, %s190, 2
      %s195 = smul.addr %s192, 3
      %s196 = sadd.s32 %s194, %s195
      %s197 = smul.addr %s196, 4
      %s198 = scalar_lea.vmem %s0, %s197
      %s199 = smul.u32 3, %s19
      %s200 = smul.u32 3, %s19
      %p201 = scmp.lt.s32.totalorder %s18, 1
      %s202 = scalar_select %p201, %s18, 1
      %p203 = scmp.lt.s32.totalorder %s200, 2
      %s204 = scalar_select %p203, %s200, 2
      %s205 = smul.addr %s202, 3
      %s206 = sadd.s32 %s204, %s205
      %s207 = smul.addr %s206, 8
      %s208 = scalar_lea.vmem %s3, %s207
      %s209 = smul.u32 3, %s19
      %v210 = vld [vmem:[%s198] sm:$0x77]
      %v211 = vld [vmem:[%s198 + $0x8] sm:$0x7]
      %v212 = vld [vmem:[%s1] sm:$0xff]
      %214 = vset.pattern.permute.xlu0 0
      %215 = vperm.xlu0 %214, %v212
      %v216 = vpop.permute.xlu0 %215
      %v220 = vperm.slane %v210, 0
      %v221 = vperm.slane %v210, 4
      %v222 = vperm.slane %v211, 0
      %v226 = vperm.slane %v220, 0
      %v227 = vperm.slane %v221, 0
      %v228 = vperm.slane %v222, 0
      %v229 = vmul.f32 %v216, %v226
      %v230 = vmul.f32 %v216, %v227
      %v231 = vmul.f32 %v216, %v228
      %232 = vset.pattern.permute.xlu0 1
      %233 = vperm.xlu0 %232, %v212
      %v234 = vpop.permute.xlu0 %233
      %v236 = vperm.slane %v210, 1
      %v237 = vperm.slane %v210, 5
      %v238 = vperm.slane %v211, 1
      %v242 = vperm.slane %v236, 1
      %v243 = vperm.slane %v237, 1
      %v244 = vperm.slane %v238, 1
      %v245 = vmul.f32 %v234, %v242
      %v246 = vmul.f32 %v234, %v243
      %v247 = vmul.f32 %v234, %v244
      %v248 = vadd.f32 %v229, %v245
      %v249 = vadd.f32 %v230, %v246
      %v250 = vadd.f32 %v231, %v247
      %251 = vset.pattern.permute.xlu0 2
      %252 = vperm.xlu0 %251, %v212
      %v253 = vpop.permute.xlu0 %252
      %v255 = vperm.slane %v210, 2
      %v256 = vperm.slane %v210, 6
      %v257 = vperm.slane %v211, 2
      %v261 = vperm.slane %v255, 2
      %v262 = vperm.slane %v256, 2
      %v263 = vperm.slane %v257, 2
      %v264 = vmul.f32 %v253, %v261
      %v265 = vmul.f32 %v253, %v262
      %v266 = vmul.f32 %v253, %v263
      %v267 = vadd.f32 %v248, %v264
      %v268 = vadd.f32 %v249, %v265
      %v269 = vadd.f32 %v250, %v266
      %v270 = vld [vmem:[%s2] sm:$0xff]
      %272 = vset.pattern.permute.xlu0 0
      %273 = vperm.xlu0 %272, %v270
      %v274 = vpop.permute.xlu0 %273
      %v276 = vadd.f32 %v267, %v274
      %v277 = vadd.f32 %v268, %v274
      %v278 = vadd.f32 %v269, %v274
      %v279 = vmax.f32 %v276, 0.0
      %v280 = vmax.f32 %v277, 0.0
      %v281 = vmax.f32 %v278, 0.0
      %282 = vst [vmem:[%s208] sm:$0xff] %v279
      %283 = vst [vmem:[%s208 + $0x8] sm:$0xff] %v280
      %vm284 = vcmask 556032
      %285 = vst.msk [vmem:[%s208 + $0x10] sm:$0xff] %vm284, %v281
      %s286 = smul.u32 3, %s19
      %p287 = scmp.lt.s32.totalorder %s18, 1
      %s288 = scalar_select %p287, %s18, 1
      %p289 = scmp.lt.s32.totalorder %s286, 2
      %s290 = scalar_select %p289, %s286, 2
      %s291 = smul.addr %s288, 3
      %s292 = sadd.s32 %s290, %s291
      %s293 = smul.addr %s292, 8
      %s294 = scalar_lea.vmem %s3, %s293
      // Predicated region
      $region33: #{_lambda_.1} parent=31 // pred_check
        %p295 = pneg %p116
      $region34: #{_lambda_.1} parent=31 // pred_check_branch
        %297 = sbr.rel (%p295) target = $region36
      $region35: #{_lambda_.1} parent=31 // pred_region
        %s298 = smul.u32 3, %s19
      $region36: #{_lambda_.1} parent=31 // pred_fallthru
        _
    $region32: #{_lambda_.1} parent=5 // pred_fallthru
      _
    %p299 = scmp.le.s32.totalorder 2, %s9
    // Predicated region
    $region37: #{_lambda_.1} parent=5 // pred_check
      %p300 = pneg %p299
    $region38: #{_lambda_.1} parent=5 // pred_check_branch
      %302 = sbr.rel (%p300) target = $region40
    $region39: #{_lambda_.1} parent=5 // pred_region
      %s303 = ssub.s32 %s9, 2
      // Predicated region
      $region41: #{_lambda_.1} parent=39 // pred_check
        %p304 = pneg %p122
      $region42: #{_lambda_.1} parent=39 // pred_check_branch
        %306 = sbr.rel (%p304) target = $region44
      $region43: #{_lambda_.1} parent=39 // pred_region
        %s307 = smul.u32 3, %s21
        %p308 = scmp.lt.s32.totalorder %s20, 1
        %s309 = scalar_select %p308, %s20, 1
        %p310 = scmp.lt.s32.totalorder %s307, 2
        %s311 = scalar_select %p310, %s307, 2
        %s312 = smul.addr %s309, 3
        %s313 = sadd.s32 %s311, %s312
        %s314 = smul.addr %s313, 8
        %s315 = scalar_lea.vmem %s3, %s314
      $region44: #{_lambda_.1} parent=39 // pred_fallthru
        _
    $region40: #{_lambda_.1} parent=5 // pred_fallthru
      _
  $region6: #{_lambda_.1} parent=0 // loop_footer
    %s13 = sadd.s32 1, %s9
  $region7: #{_lambda_.1} parent=0 // loop_footer_branch
    %8 = sbr.rel target = $region3
  $region8: #{_lambda_.1} parent=0 // loop_exit
    _

</llo_original>
